<compile_context>
chip_gen: v7x
topology: tpu7x:2x2x1
jax: 0.10.0
libtpu: 0.0.40
codegen_flags: <defaults>
</compile_context>

<pallas_src>
import functools

import jax
import jax.numpy as jnp
from jax import lax
from jax.experimental import pallas as pl
from jax.experimental.pallas import tpu as pltpu


def _sigmoid(z):
    # One EUP op (tanh) + VPU mul/add instead of exp + divide (2 EUP ops).
    return 0.5 * (jnp.tanh(0.5 * z) + 1.0)


def _linear_sig_kernel(xT_ref, w1_ref, b1_ref, w2_ref, b2_ref, oT_ref, *,
                       chunk, hidden_bf16):
    # Constant operands: loaded once per grid step, hoisted out of the chunk loop.
    w1 = w1_ref[...]            # [l, 2]  (PyTorch [out, in])
    w1c0 = w1[:, 0:1]           # [l, 1]
    w1c1 = w1[:, 1:2]           # [l, 1]
    b1 = b1_ref[...]            # [l, 1]
    w2 = w2_ref[...]            # [l, 1]
    b2 = b2_ref[...]            # [1, 1]

    n_chunks = xT_ref.shape[1] // chunk   # static: chunk divides the block

    def body(c, carry):
        off = pl.multiple_of(c * chunk, 128)
        xc = xT_ref[:, pl.ds(off, chunk)].astype(jnp.float32)       # [2, C]

        # Layer 1 (K=2): pure VPU mul/add, no MXU push/pop.
        h = w1c0 * xc[0:1, :] + w1c1 * xc[1:2, :] + b1               # [l, C] f32
        if hidden_bf16:
            h = _sigmoid(h.astype(jnp.bfloat16))                     # bf16 EUP tanh
        else:
            h = _sigmoid(h)

        # Layer 2 (N=1): weighted sublane reduction (XLU), f32 accumulate.
        y = jnp.sum(w2 * h.astype(jnp.float32), axis=0, keepdims=True) + b2  # [1, C]
        oT_ref[:, pl.ds(off, chunk)] = _sigmoid(y).astype(oT_ref.dtype)
        return carry

    lax.fori_loop(0, n_chunks, body, None, unroll=True)


@functools.partial(jax.jit, static_argnames=("block_b", "hidden_bf16"))
def linear_sig(x, w1, b1, w2, b2, *, block_b=4096, hidden_bf16=False):
    """Fused LinearSig forward.

    x:  [B, 2]   input (row-major, features last)
    w1: [l, 2]   linear1.weight (PyTorch [out, in] layout)
    b1: [l]      linear1.bias
    w2: [1, l]   linear2.weight
    b2: [1]      linear2.bias
    returns [B, 1]
    """
    B = x.shape[0]
    l = w1.shape[0]
    out_dtype = x.dtype

    # Batch-on-lanes layout (lane-dense [1, B] output, features on sublanes).
    xT = x.T                                          # [2, B]
    w1f = w1.astype(jnp.float32)                      # [l, 2]
    b1c = b1.reshape(l, 1).astype(jnp.float32)        # [l, 1]
    w2c = w2.reshape(1, l).T.astype(jnp.float32)      # [l, 1]
    b2c = b2.reshape(1, 1).astype(jnp.float32)        # [1, 1]

    # Tiny-batch case: pad to one full 128-lane tile (negligible cost).
    if B < 128:
        xT = jnp.pad(xT, ((0, 0), (0, 128 - B)))
        Bout = 128
    else:
        Bout = B

    # --- batch tile (lanes): multiple of 128, as large as block_b allows ---
    block_b = max(128, (int(block_b) // 128) * 128)
    bt = min(block_b, 128 * pl.cdiv(Bout, 128))
    if Bout > 128 and pl.cdiv(Bout, bt) < 2:
        # Keep >= 2 grid steps so the "parallel" axis feeds both v7x cores.
        bt = 128 * pl.cdiv(pl.cdiv(Bout, 2), 128)
    bt = max(128, bt)

    # --- inner sub-chunk (lanes): cap vreg pressure of the [l, chunk] hidden ---
    chunk = 128
    for c in (512, 256):
        if bt % c == 0 and l * c * 4 <= 64 * 1024:    # h <= ~16 vregs
            chunk = c
            break

    kernel = functools.partial(_linear_sig_kernel, chunk=chunk,
                               hidden_bf16=hidden_bf16)

    grid = (pl.cdiv(Bout, bt),)
    yT = pl.pallas_call(
        kernel,
        out_shape=jax.ShapeDtypeStruct((1, Bout), out_dtype),
        grid=grid,
        in_specs=[
            pl.BlockSpec((2, bt), lambda i: (0, i)),   # x^T tiled over batch
            pl.BlockSpec((l, 2), lambda i: (0, 0)),    # weights / biases stay
            pl.BlockSpec((l, 1), lambda i: (0, 0)),    # VMEM-resident
            pl.BlockSpec((l, 1), lambda i: (0, 0)),
            pl.BlockSpec((1, 1), lambda i: (0, 0)),
        ],
        out_specs=pl.BlockSpec((1, bt), lambda i: (0, i)),
        compiler_params=pltpu.CompilerParams(
            dimension_semantics=("parallel",),         # shard batch on v7x cores
        ),
    )(xT, w1f, b1c, w2c, b2c)

    # Full-size slice is a no-op when B >= 128; reshape [1,B]->[B,1] is free.
    return yT[:, :B].reshape(B, 1).astype(out_dtype)


def init_params(key, l):
    """Deterministic params in PyTorch nn.Linear layout ([out, in] weights)."""
    k1, k2, k3, k4 = jax.random.split(key, 4)
    w1 = jax.random.uniform(k1, (l, 2), jnp.float32, -0.5, 0.5)
    b1 = jax.random.uniform(k2, (l,), jnp.float32, -0.5, 0.5)
    w2 = jax.random.uniform(k3, (1, l), jnp.float32, -0.5, 0.5)
    b2 = jax.random.uniform(k4, (1,), jnp.float32, -0.5, 0.5)
    return w1, b1, w2, b2


if __name__ == "__main__":
    key = jax.random.PRNGKey(0)
    kx, kp, kx2 = jax.random.split(key, 3)

    batch = 8          # small batch of (position, velocity) states
    hidden = 32        # l

    x = jax.random.normal(kx, (batch, 2), jnp.float32)
    w1, b1, w2, b2 = init_params(kp, hidden)

    def ref_fn(xv):
        # y = sigmoid(sigmoid(x @ W1^T + b1) @ W2^T + b2)
        return jax.nn.sigmoid(jax.nn.sigmoid(xv @ w1.T + b1) @ w2.T + b2)

    # 1) Small-batch path (single padded 128-lane tile).
    out = linear_sig(x, w1, b1, w2, b2)
    jax.block_until_ready(out)
    assert out.shape == (batch, 1)
    assert jnp.allclose(out, ref_fn(x), atol=1e-5, rtol=1e-5)

    # 2) Ragged multi-tile path (2 grid steps, boundary clipping, chunk loop).
    x2 = jax.random.normal(kx2, (1000, 2), jnp.float32)
    out2 = linear_sig(x2, w1, b1, w2, b2)
    jax.block_until_ready(out2)
    assert out2.shape == (1000, 1)
    assert jnp.allclose(out2, ref_fn(x2), atol=1e-5, rtol=1e-5)

    # 3) Optional bf16 hidden-activation path (v6e/v7x EUP lever); looser tol.
    out3 = linear_sig(x2, w1, b1, w2, b2, hidden_bf16=True)
    jax.block_until_ready(out3)
    assert jnp.allclose(out3, ref_fn(x2), atol=5e-2, rtol=0.0)

    print("KERNEL_OK")
</pallas_src>

<mosaic_0001>
module attributes {stable_mosaic.version = 11 : i64} {
  func.func @_linear_sig_kernel(%arg0: i32, %arg1: memref<2x128xf32, #tpu.memory_space<vmem>>, %arg2: memref<32x2xf32, #tpu.memory_space<vmem>>, %arg3: memref<32x1xf32, #tpu.memory_space<vmem>>, %arg4: memref<32x1xf32, #tpu.memory_space<vmem>>, %arg5: memref<1x1xf32, #tpu.memory_space<vmem>>, %arg6: memref<1x128xf32, #tpu.memory_space<vmem>>) attributes {dimension_semantics = [#tpu.dimension_semantics<parallel>], iteration_bounds = array<i64: 1>, scalar_prefetch = 0 : i64, scratch_operands = 0 : i64, tpu.core_type = #tpu.core_type<tc>, window_params = [{transform_indices = @transform_0, window_bounds = array<i64: 2, 128>}, {pipeline_mode = #tpu.pipeline_mode<synchronous>, transform_indices = @transform_1, window_bounds = array<i64: 32, 2>}, {pipeline_mode = #tpu.pipeline_mode<synchronous>, transform_indices = @transform_2, window_bounds = array<i64: 32, 1>}, {pipeline_mode = #tpu.pipeline_mode<synchronous>, transform_indices = @transform_3, window_bounds = array<i64: 32, 1>}, {pipeline_mode = #tpu.pipeline_mode<synchronous>, transform_indices = @transform_4, window_bounds = array<i64: 1, 1>}, {transform_indices = @transform_5, window_bounds = array<i64: 1, 128>}]} {
    %c0 = arith.constant 0 : index
    %c0_0 = arith.constant 0 : index
    %0 = vector.load %arg2[%c0, %c0_0] : memref<32x2xf32, #tpu.memory_space<vmem>>, vector<32x2xf32>
    %1 = vector.extract_strided_slice %0 {offsets = [0, 0], sizes = [32, 1], strides = [1, 1]} : vector<32x2xf32> to vector<32x1xf32>
    %2 = vector.extract_strided_slice %0 {offsets = [0, 1], sizes = [32, 1], strides = [1, 1]} : vector<32x2xf32> to vector<32x1xf32>
    %c0_1 = arith.constant 0 : index
    %c0_2 = arith.constant 0 : index
    %3 = vector.load %arg3[%c0_1, %c0_2] : memref<32x1xf32, #tpu.memory_space<vmem>>, vector<32x1xf32>
    %c0_3 = arith.constant 0 : index
    %c0_4 = arith.constant 0 : index
    %4 = vector.load %arg4[%c0_3, %c0_4] : memref<32x1xf32, #tpu.memory_space<vmem>>, vector<32x1xf32>
    %c0_5 = arith.constant 0 : index
    %c0_6 = arith.constant 0 : index
    %5 = vector.load %arg5[%c0_5, %c0_6] : memref<1x1xf32, #tpu.memory_space<vmem>>, vector<1x1xf32>
    %c0_i32 = arith.constant 0 : i32
    %c128_i32 = arith.constant 128 : i32
    %6 = arith.muli %c0_i32, %c128_i32 : i32
    %7 = tpu.assume_multiple %6, 128 : i32
    %c0_7 = arith.constant 0 : index
    %8 = arith.index_cast %7 : i32 to index
    %9 = vector.load %arg1[%c0_7, %8] : memref<2x128xf32, #tpu.memory_space<vmem>>, vector<2x128xf32>
    %10 = vector.extract_strided_slice %9 {offsets = [0, 0], sizes = [1, 128], strides = [1, 1]} : vector<2x128xf32> to vector<1x128xf32>
    %11 = vector.broadcast %1 : vector<32x1xf32> to vector<32x128xf32>
    %12 = vector.broadcast %10 : vector<1x128xf32> to vector<32x128xf32>
    %13 = arith.mulf %11, %12 : vector<32x128xf32>
    %14 = vector.extract_strided_slice %9 {offsets = [1, 0], sizes = [1, 128], strides = [1, 1]} : vector<2x128xf32> to vector<1x128xf32>
    %15 = vector.broadcast %2 : vector<32x1xf32> to vector<32x128xf32>
    %16 = vector.broadcast %14 : vector<1x128xf32> to vector<32x128xf32>
    %17 = arith.mulf %15, %16 : vector<32x128xf32>
    %18 = arith.addf %13, %17 : vector<32x128xf32>
    %19 = vector.broadcast %3 : vector<32x1xf32> to vector<32x128xf32>
    %20 = arith.addf %18, %19 : vector<32x128xf32>
    %cst = arith.constant 5.000000e-01 : f32
    %21 = vector.broadcast %cst : f32 to vector<32x128xf32>
    %22 = arith.mulf %21, %20 : vector<32x128xf32>
    %23 = math.tanh %22 : vector<32x128xf32>
    %cst_8 = arith.constant 1.000000e+00 : f32
    %24 = vector.broadcast %cst_8 : f32 to vector<32x128xf32>
    %25 = arith.addf %23, %24 : vector<32x128xf32>
    %cst_9 = arith.constant 5.000000e-01 : f32
    %26 = vector.broadcast %cst_9 : f32 to vector<32x128xf32>
    %27 = arith.mulf %26, %25 : vector<32x128xf32>
    %28 = vector.broadcast %4 : vector<32x1xf32> to vector<32x128xf32>
    %29 = arith.mulf %28, %27 : vector<32x128xf32>
    %cst_10 = arith.constant dense<0.000000e+00> : vector<128xf32>
    %30 = vector.multi_reduction <add>, %29, %cst_10 [0] : vector<32x128xf32> to vector<128xf32>
    %31 = vector.shape_cast %30 : vector<128xf32> to vector<1x128xf32>
    %32 = vector.broadcast %5 : vector<1x1xf32> to vector<1x128xf32>
    %33 = arith.addf %31, %32 : vector<1x128xf32>
    %cst_11 = arith.constant 5.000000e-01 : f32
    %34 = vector.broadcast %cst_11 : f32 to vector<1x128xf32>
    %35 = arith.mulf %34, %33 : vector<1x128xf32>
    %36 = math.tanh %35 : vector<1x128xf32>
    %cst_12 = arith.constant 1.000000e+00 : f32
    %37 = vector.broadcast %cst_12 : f32 to vector<1x128xf32>
    %38 = arith.addf %36, %37 : vector<1x128xf32>
    %cst_13 = arith.constant 5.000000e-01 : f32
    %39 = vector.broadcast %cst_13 : f32 to vector<1x128xf32>
    %40 = arith.mulf %39, %38 : vector<1x128xf32>
    %c0_14 = arith.constant 0 : index
    %41 = arith.index_cast %7 : i32 to index
    %42 = vector.load %arg6[%c0_14, %41] : memref<1x128xf32, #tpu.memory_space<vmem>>, vector<1x128xf32>
    tpu.vector_store %arg6[%c0_14, %41], %40 {strides = array<i32>} : memref<1x128xf32, #tpu.memory_space<vmem>>, vector<1x128xf32>,
    %c1_i32 = arith.constant 1 : i32
    return
  }
  func.func @transform_0(%arg0: i32) -> (i32, i32) {
    %c0_i32 = arith.constant 0 : i32
    %c0_i32_0 = arith.constant 0 : i32
    return %c0_i32, %arg0 : i32, i32
  }
  func.func @transform_1(%arg0: i32) -> (i32, i32) {
    %c0_i32 = arith.constant 0 : i32
    %c0_i32_0 = arith.constant 0 : i32
    %c0_i32_1 = arith.constant 0 : i32
    return %c0_i32, %c0_i32_0 : i32, i32
  }
  func.func @transform_2(%arg0: i32) -> (i32, i32) {
    %c0_i32 = arith.constant 0 : i32
    %c0_i32_0 = arith.constant 0 : i32
    %c0_i32_1 = arith.constant 0 : i32
    return %c0_i32, %c0_i32_0 : i32, i32
  }
  func.func @transform_3(%arg0: i32) -> (i32, i32) {
    %c0_i32 = arith.constant 0 : i32
    %c0_i32_0 = arith.constant 0 : i32
    %c0_i32_1 = arith.constant 0 : i32
    return %c0_i32, %c0_i32_0 : i32, i32
  }
  func.func @transform_4(%arg0: i32) -> (i32, i32) {
    %c0_i32 = arith.constant 0 : i32
    %c0_i32_0 = arith.constant 0 : i32
    %c0_i32_1 = arith.constant 0 : i32
    return %c0_i32, %c0_i32_0 : i32, i32
  }
  func.func @transform_5(%arg0: i32) -> (i32, i32) {
    %c0_i32 = arith.constant 0 : i32
    %c0_i32_0 = arith.constant 0 : i32
    return %c0_i32, %arg0 : i32, i32
  }
}

</mosaic_0001>

<llo_original>
// kernel: linear_sig.1
$region0: #{linear_sig.1}
  #allocation0 [shape = 'u32[]', space=smem, size = 0x4, offset = 0x4, fixed_abs, tag = 'smem constant byte address 0x4 - core index']
  #allocation1 [shape = 'u32[144,128]{1,0:T(1,128)}', space=vmem, size = 0x12000, scoped, tag = 'internal scratch']
  #allocation2 [shape = 'f32[1,1]{1,0:T(1,128)S(1)}', space=vmem, size = 0x200, scoped, tag = 'scoped memory for linear_sig.1']
  %s0 = inlined_call_operand.vmem [shape: f32[2,128], index: 0, kind: input, shape index: {}]
  %s1 = inlined_call_operand.vmem [shape: f32[32,2], index: 1, kind: input, shape index: {}]
  %s2 = inlined_call_operand.vmem [shape: f32[32,1], index: 2, kind: input, shape index: {}]
  %s3 = inlined_call_operand.vmem [shape: f32[32,1], index: 3, kind: input, shape index: {}]
  %s4 = inlined_call_operand.<no memory space> [shape: f32[1,1], index: 4, kind: input, shape index: {}]
  %s5 = inlined_call_operand.vmem [shape: f32[1,128], index: 5, kind: output, shape index: {}]
  %s6 = sld [smem:[#allocation0]]
  $region30: #{linear_sig.1} parent=0
    _
  %s8 = ssub.s32 1, %s6
  %s9 = scalar_select 0, %s8, %s6
  %v10 = vstv %s4
  %11 = vst [vmem:[#allocation2] sm:$0x1] %v10
  // Predicated region
  $region2: #{linear_sig.1} parent=0 // pred_check
    _
  $region3: #{linear_sig.1} parent=0 // pred_check_branch
    %13 = sbr.rel (0) target = $region5
  $region4: #{linear_sig.1} parent=0 // pred_region
    _
  $region5: #{linear_sig.1} parent=0 // pred_fallthru
    _
  // Predicated region
  $region6: #{linear_sig.1} parent=0 // pred_check
    _
  $region7: #{linear_sig.1} parent=0 // pred_check_branch
    %15 = sbr.rel (0) target = $region9
  $region8: #{linear_sig.1} parent=0 // pred_region
    _
  $region9: #{linear_sig.1} parent=0 // pred_fallthru
    _
  // Predicated region
  $region10: #{linear_sig.1} parent=0 // pred_check
    _
  $region11: #{linear_sig.1} parent=0 // pred_check_branch
    %17 = sbr.rel (0) target = $region13
  $region12: #{linear_sig.1} parent=0 // pred_region
    _
  $region13: #{linear_sig.1} parent=0 // pred_fallthru
    _
  // Predicated region
  $region14: #{linear_sig.1} parent=0 // pred_check
    _
  $region15: #{linear_sig.1} parent=0 // pred_check_branch
    %19 = sbr.rel (0) target = $region17
  $region16: #{linear_sig.1} parent=0 // pred_region
    _
  $region17: #{linear_sig.1} parent=0 // pred_fallthru
    _
  // Predicated region
  $region18: #{linear_sig.1} parent=0 // pred_check
    _
  $region19: #{linear_sig.1} parent=0 // pred_check_branch
    %21 = sbr.rel (0) target = $region21
  $region20: #{linear_sig.1} parent=0 // pred_region
    _
  $region21: #{linear_sig.1} parent=0 // pred_fallthru
    _
  %v22 = vld [vmem:[%s1] sm:$0xff]
  %v23 = vld [vmem:[%s1 + $0x8] sm:$0xff]
  %v24 = vld [vmem:[%s1 + $0x10] sm:$0xff]
  %v25 = vld [vmem:[%s1 + $0x18] sm:$0xff]
  %v26 = vld [vmem:[%s2] sm:$0xff]
  %v27 = vld [vmem:[%s2 + $0x8] sm:$0xff]
  %v28 = vld [vmem:[%s2 + $0x10] sm:$0xff]
  %v29 = vld [vmem:[%s2 + $0x18] sm:$0xff]
  %v30 = vld [vmem:[%s3] sm:$0xff]
  %v31 = vld [vmem:[%s3 + $0x8] sm:$0xff]
  %v32 = vld [vmem:[%s3 + $0x10] sm:$0xff]
  %v33 = vld [vmem:[%s3 + $0x18] sm:$0xff]
  %v34 = vld [vmem:[#allocation2] sm:$0x1]
  %v35 = vld [vmem:[%s0] sm:$0x3]
  %37 = vset.pattern.permute.xlu0 0
  %38 = vperm.xlu0 %37, %v22
  %v39 = vpop.permute.xlu0 %38
  %42 = vset.pattern.permute.xlu0 0
  %43 = vperm.xlu0 %42, %v23
  %v44 = vpop.permute.xlu0 %43
  %47 = vset.pattern.permute.xlu0 0
  %48 = vperm.xlu0 %47, %v24
  %v49 = vpop.permute.xlu0 %48
  %52 = vset.pattern.permute.xlu0 0
  %53 = vperm.xlu0 %52, %v25
  %v54 = vpop.permute.xlu0 %53
  %v56 = vlaneseq
  %v57 = vshrl.u32 %v56, 7
  %v58 = vsub.s32 0, %v57
  %v59 = vrot.slane %v35, %v58
  %v60 = vmul.f32 %v39, %v59
  %v61 = vmul.f32 %v44, %v59
  %v62 = vmul.f32 %v49, %v59
  %v63 = vmul.f32 %v54, %v59
  %64 = vset.pattern.permute.xlu0 1
  %65 = vperm.xlu0 %64, %v22
  %v66 = vpop.permute.xlu0 %65
  %68 = vset.pattern.permute.xlu0 1
  %69 = vperm.xlu0 %68, %v23
  %v70 = vpop.permute.xlu0 %69
  %72 = vset.pattern.permute.xlu0 1
  %73 = vperm.xlu0 %72, %v24
  %v74 = vpop.permute.xlu0 %73
  %76 = vset.pattern.permute.xlu0 1
  %77 = vperm.xlu0 %76, %v25
  %v78 = vpop.permute.xlu0 %77
  %v80 = vlaneseq
  %v81 = vshrl.u32 %v80, 7
  %v82 = vsub.s32 1, %v81
  %v83 = vrot.slane %v35, %v82
  %v84 = vmul.f32 %v66, %v83
  %v85 = vmul.f32 %v70, %v83
  %v86 = vmul.f32 %v74, %v83
  %v87 = vmul.f32 %v78, %v83
  %v88 = vadd.f32 %v60, %v84
  %v89 = vadd.f32 %v61, %v85
  %v90 = vadd.f32 %v62, %v86
  %v91 = vadd.f32 %v63, %v87
  %93 = vset.pattern.permute.xlu0 0
  %94 = vperm.xlu0 %93, %v26
  %v95 = vpop.permute.xlu0 %94
  %98 = vset.pattern.permute.xlu0 0
  %99 = vperm.xlu0 %98, %v27
  %v100 = vpop.permute.xlu0 %99
  %103 = vset.pattern.permute.xlu0 0
  %104 = vperm.xlu0 %103, %v28
  %v105 = vpop.permute.xlu0 %104
  %108 = vset.pattern.permute.xlu0 0
  %109 = vperm.xlu0 %108, %v29
  %v110 = vpop.permute.xlu0 %109
  %v112 = vadd.f32 %v88, %v95
  %v113 = vadd.f32 %v89, %v100
  %v114 = vadd.f32 %v90, %v105
  %v115 = vadd.f32 %v91, %v110
  %v116 = vmul.f32 %v112, 0.5
  %v117 = vmul.f32 %v113, 0.5
  %v118 = vmul.f32 %v114, 0.5
  %v119 = vmul.f32 %v115, 0.5
  %v120 = vtanh.pop %v116
  %v121 = vtanh.pop %v117
  %v122 = vtanh.pop %v118
  %v123 = vtanh.pop %v119
  %v124 = vadd.f32 %v120, 1.0
  %v125 = vadd.f32 %v121, 1.0
  %v126 = vadd.f32 %v122, 1.0
  %v127 = vadd.f32 %v123, 1.0
  %v128 = vmul.f32 %v124, 0.5
  %v129 = vmul.f32 %v125, 0.5
  %v130 = vmul.f32 %v126, 0.5
  %v131 = vmul.f32 %v127, 0.5
  %133 = vset.pattern.permute.xlu0 0
  %134 = vperm.xlu0 %133, %v30
  %v135 = vpop.permute.xlu0 %134
  %138 = vset.pattern.permute.xlu0 0
  %139 = vperm.xlu0 %138, %v31
  %v140 = vpop.permute.xlu0 %139
  %143 = vset.pattern.permute.xlu0 0
  %144 = vperm.xlu0 %143, %v32
  %v145 = vpop.permute.xlu0 %144
  %148 = vset.pattern.permute.xlu0 0
  %149 = vperm.xlu0 %148, %v33
  %v150 = vpop.permute.xlu0 %149
  %v152 = vmul.f32 %v135, %v128
  %v153 = vmul.f32 %v140, %v129
  %v154 = vmul.f32 %v145, %v130
  %v155 = vmul.f32 %v150, %v131
  %v156 = vadd.f32 %v152, %v153
  %v157 = vadd.f32 %v156, %v154
  %v158 = vadd.f32 %v157, %v155
  %v159 = vrot.slane %v158, 4
  %v160 = vadd.f32 %v158, %v159
  %v161 = vrot.slane %v160, 2
  %v162 = vadd.f32 %v160, %v161
  %v163 = vrot.slane %v162, 1
  %v164 = vadd.f32 %v162, %v163
  %166 = vset.pattern.permute.xlu0 0
  %167 = vperm.xlu0 %166, %v34
  %v168 = vpop.permute.xlu0 %167
  %v170 = vlaneseq
  %v171 = vshrl.u32 %v170, 7
  %v172 = vsub.s32 0, %v171
  %v173 = vrot.slane %v168, %v172
  %v174 = vadd.f32 %v164, %v173
  %v175 = vmul.f32 %v174, 0.5
  %v176 = vtanh.pop %v175
  %v177 = vadd.f32 %v176, 1.0
  %v178 = vmul.f32 %v177, 0.5
  %179 = vst [vmem:[%s5] sm:$0x1] %v178
  // Predicated region
  $region22: #{linear_sig.1} parent=0 // pred_check
    _
  $region23: #{linear_sig.1} parent=0 // pred_check_branch
    %181 = sbr.rel (0) target = $region25
  $region24: #{linear_sig.1} parent=0 // pred_region
    _
  $region25: #{linear_sig.1} parent=0 // pred_fallthru
    _
  // Predicated region
  $region26: #{linear_sig.1} parent=0 // pred_check
    _
  $region27: #{linear_sig.1} parent=0 // pred_check_branch
    %183 = sbr.rel (0) target = $region29
  $region28: #{linear_sig.1} parent=0 // pred_region
    _
  $region29: #{linear_sig.1} parent=0 // pred_fallthru
    _

</llo_original>
